<compile_context>
chip_gen: v7x
topology: tpu7x:2x2x1
jax: 0.10.0
libtpu: 0.0.40
codegen_flags: <defaults>
</compile_context>

<pallas_src>
import numpy as np
import jax
import jax.numpy as jnp
from jax.experimental import pallas as pl
from jax.experimental.pallas import tpu as pltpu

IMAGE_PAD_TOKEN_ID = 151655

# ---- synthetic config (small but TPU-tile friendly) -------------------------
VISUAL_VOCAB = 256   # visual_tokenizer_config.vocab_size
HIDDEN       = 128   # config.hidden_size (LLM hidden)
D_SUB        = 128   # per-visual-token feature dim (flattened patch chunk)
T_PER_PATCH  = 8     # visual tokens produced per image patch
FFN          = 256   # stand-in LLM MLP width
TEXT_VOCAB   = 512   # stand-in LLM text vocab (pad id is remapped before lookup)


# =============================== Pallas kernels ===============================

def _vision_kernel(x_ref, w_head_ref, vte_ref, o_ref):
    """Fused visual tokenizer + VTE float path.

    probs = softmax(x @ W_head)  (over visual vocab, kept in VMEM)
    out   = probs @ vte.weight
    """
    logits = jnp.dot(x_ref[...], w_head_ref[...],
                     preferred_element_type=jnp.float32)          # (M, V) f32
    m = jnp.max(logits, axis=-1, keepdims=True)
    e = jnp.exp(logits - m)
    denom = jnp.sum(e, axis=-1, keepdims=True)
    probs = e * pl.reciprocal(denom, approx=True)                  # EUP recip
    o_ref[...] = jnp.dot(probs.astype(vte_ref.dtype), vte_ref[...],
                         preferred_element_type=jnp.float32)       # (M, H) f32


def _llm_block_kernel(x_ref, rmsw_ref, wgu_ref, wd_ref, o_ref):
    """Stand-in LLM block: y = x + down(silu(norm(x)@Wg) * (norm(x)@Wu)).

    Gate/up projections are fused into one (H, 2*FFN) matmul.
    """
    x = x_ref[...]                                                 # (S, H) f32
    var = jnp.mean(x * x, axis=-1, keepdims=True)
    xn = x * jax.lax.rsqrt(var + 1e-6) * rmsw_ref[...]
    gu = jnp.dot(xn.astype(wgu_ref.dtype), wgu_ref[...],
                 preferred_element_type=jnp.float32)               # (S, 2*FFN) f32
    g = gu[:, :FFN]
    u = gu[:, FFN:]
    h = (g * jax.nn.sigmoid(g)) * u
    o_ref[...] = x + jnp.dot(h.astype(wd_ref.dtype), wd_ref[...],
                             preferred_element_type=jnp.float32)


# ============================== Pallas wrappers ===============================

def visual_tokenize_and_embed(flat_patches, w_head, vte_w):
    """(N, T*D_SUB) patches -> (N, T, HIDDEN) visual embeddings (fused, one kernel)."""
    n = flat_patches.shape[0]
    x = flat_patches.reshape(n * T_PER_PATCH, D_SUB).astype(w_head.dtype)  # .to(target_dtype)
    M, D = x.shape
    V = w_head.shape[1]
    H = vte_w.shape[1]
    out = pl.pallas_call(
        _vision_kernel,
        out_shape=jax.ShapeDtypeStruct((M, H), jnp.float32),
        grid_spec=pltpu.PrefetchScalarGridSpec(
            num_scalar_prefetch=0,
            grid=(1,),                                   # whole problem in one step
            in_specs=[pl.BlockSpec((M, D), lambda i: (0, 0)),
                      pl.BlockSpec((D, V), lambda i: (0, 0)),
                      pl.BlockSpec((V, H), lambda i: (0, 0))],
            out_specs=pl.BlockSpec((M, H), lambda i: (0, 0))),
        compiler_params=pltpu.CompilerParams(dimension_semantics=("arbitrary",)),
    )(x, w_head, vte_w)
    return out.reshape(n, T_PER_PATCH, H)


def llm_forward(inputs_embeds, rms_w, w_gate_up, w_down):
    """Stand-in LLM over (S, H) input embeddings -> (S, H) hidden states (one step)."""
    S, H = inputs_embeds.shape
    F2 = w_gate_up.shape[1]
    F = w_down.shape[0]
    return pl.pallas_call(
        _llm_block_kernel,
        out_shape=jax.ShapeDtypeStruct((S, H), jnp.float32),
        grid_spec=pltpu.PrefetchScalarGridSpec(
            num_scalar_prefetch=0,
            grid=(1,),
            in_specs=[pl.BlockSpec((S, H), lambda i: (0, 0)),
                      pl.BlockSpec((1, H), lambda i: (0, 0)),
                      pl.BlockSpec((H, F2), lambda i: (0, 0)),
                      pl.BlockSpec((F, H), lambda i: (0, 0))],
            out_specs=pl.BlockSpec((S, H), lambda i: (0, 0))),
        compiler_params=pltpu.CompilerParams(dimension_semantics=("arbitrary",)),
    )(inputs_embeds, rms_w, w_gate_up, w_down)


# =========================== model glue (plain JAX) ===========================

def process_image_input(flat_data, indicator_tokens, patches_per_image, w_head, vte_w):
    """Mirror of Ovis2ForConditionalGeneration._process_image_input."""
    indicator_per_image = [x + 1 if x > 1 else x + 2 for x in patches_per_image]

    visual_embeds = visual_tokenize_and_embed(flat_data, w_head, vte_w)       # (N, T, H)
    indicator_embeds = jnp.take(vte_w, indicator_tokens, axis=0).astype(jnp.float32)

    vis_splits = jnp.split(visual_embeds, np.cumsum(patches_per_image)[:-1], axis=0)
    ind_splits = jnp.split(indicator_embeds, np.cumsum(indicator_per_image)[:-1], axis=0)

    vision_embeddings = []
    for indicator, visual in zip(ind_splits, vis_splits):
        per_image = []
        p = visual.shape[0]
        i = 0  # NOTE: matches the PyTorch loop-variable reuse (assumes >= 1 patch/image)
        for i in range(p):
            per_image.append(jnp.concatenate([indicator[i:i + 1], visual[i]], axis=0))
        per_image.append(indicator[i + 1:])
        vision_embeddings.append(jnp.concatenate(per_image, axis=0))
    return tuple(vision_embeddings)


def get_input_embeddings(input_ids, text_embed, multimodal_embeddings):
    """llm.get_input_embeddings + merge_multimodal_embeddings([IMAGE_PAD_TOKEN_ID])."""
    pad_mask = input_ids == IMAGE_PAD_TOKEN_ID
    safe_ids = jnp.where(pad_mask, 0, input_ids)          # pad rows are overwritten below
    inputs_embeds = jnp.take(text_embed, safe_ids, axis=0)
    if multimodal_embeddings is None:
        return inputs_embeds
    mm = jnp.concatenate(multimodal_embeddings, axis=0)    # (num_mm_tokens, H)
    slot = jnp.cumsum(pad_mask.astype(jnp.int32)) - 1
    slot = jnp.clip(slot, 0, mm.shape[0] - 1)
    return jnp.where(pad_mask[:, None], mm[slot], inputs_embeds)


def ovis2_forward(input_ids, positions, flat_data, indicator_tokens,
                  patches_per_image, params):
    """Ovis2ForConditionalGeneration.forward (prefill path, no intermediate tensors)."""
    del positions  # TODO(synk): real LLM applies RoPE with positions; stand-in block ignores them.
    vision_embeddings = process_image_input(
        flat_data, indicator_tokens, patches_per_image,
        params["w_head"], params["vte_w"])
    inputs_embeds = get_input_embeddings(input_ids, params["text_embed"], vision_embeddings)
    hidden_states = llm_forward(inputs_embeds, params["rms_w"],
                                params["w_gate_up"], params["w_down"])
    return hidden_states


# =============================== pure-JAX ref =================================

def _ref_forward(input_ids, flat_data, indicator_tokens, patches_per_image, params):
    n = flat_data.shape[0]
    x = flat_data.reshape(n * T_PER_PATCH, D_SUB).astype(params["w_head"].dtype)
    logits = jnp.dot(x, params["w_head"], preferred_element_type=jnp.float32)
    probs = jax.nn.softmax(logits, axis=-1)
    visual_embeds = jnp.dot(probs.astype(params["vte_w"].dtype), params["vte_w"],
                            preferred_element_type=jnp.float32)
    visual_embeds = visual_embeds.reshape(n, T_PER_PATCH, HIDDEN)
    indicator_embeds = params["vte_w"][indicator_tokens].astype(jnp.float32)

    indicator_per_image = [p + 1 if p > 1 else p + 2 for p in patches_per_image]
    vis_splits = jnp.split(visual_embeds, np.cumsum(patches_per_image)[:-1], axis=0)
    ind_splits = jnp.split(indicator_embeds, np.cumsum(indicator_per_image)[:-1], axis=0)
    mm = []
    for ind, vis in zip(ind_splits, vis_splits):
        rows = []
        i = 0
        for i in range(vis.shape[0]):
            rows.append(jnp.concatenate([ind[i:i + 1], vis[i]], axis=0))
        rows.append(ind[i + 1:])
        mm.append(jnp.concatenate(rows, axis=0))
    mm = jnp.concatenate(mm, axis=0)

    pad_mask = input_ids == IMAGE_PAD_TOKEN_ID
    emb = params["text_embed"][jnp.where(pad_mask, 0, input_ids)]
    slot = jnp.clip(jnp.cumsum(pad_mask.astype(jnp.int32)) - 1, 0, mm.shape[0] - 1)
    x = jnp.where(pad_mask[:, None], mm[slot], emb)

    var = jnp.mean(x * x, axis=-1, keepdims=True)
    xn = x * jax.lax.rsqrt(var + 1e-6) * params["rms_w"]
    gu = jnp.dot(xn.astype(params["w_gate_up"].dtype), params["w_gate_up"],
                 preferred_element_type=jnp.float32)
    g, u = gu[:, :FFN], gu[:, FFN:]
    h = (g * jax.nn.sigmoid(g)) * u
    return x + jnp.dot(h.astype(params["w_down"].dtype), params["w_down"],
                       preferred_element_type=jnp.float32)


# ==================================== main ====================================

if __name__ == "__main__":
    key = jax.random.PRNGKey(0)
    ks = jax.random.split(key, 8)

    w_gate = jax.random.normal(ks[3], (HIDDEN, FFN), jnp.float32) * 0.05
    w_up = jax.random.normal(ks[4], (HIDDEN, FFN), jnp.float32) * 0.05

    params = dict(
        # matmul weights stored in bf16 (activations cast in-kernel, f32 accumulation)
        w_head=(jax.random.normal(ks[0], (D_SUB, VISUAL_VOCAB), jnp.float32) * 0.05
                ).astype(jnp.bfloat16),
        vte_w=(jax.random.normal(ks[1], (VISUAL_VOCAB, HIDDEN), jnp.float32) * 0.05
               ).astype(jnp.bfloat16),
        text_embed=jax.random.normal(ks[2], (TEXT_VOCAB, HIDDEN), jnp.float32) * 0.05,
        rms_w=jnp.ones((1, HIDDEN), jnp.float32),
        w_gate_up=jnp.concatenate([w_gate, w_up], axis=1).astype(jnp.bfloat16),
        w_down=(jax.random.normal(ks[5], (FFN, HIDDEN), jnp.float32) * 0.05
                ).astype(jnp.bfloat16),
    )

    # Two images: 1 patch and 3 patches (flat_data = flatten_bn of pixel patches).
    patches_per_image = [1, 3]
    n_patches = sum(patches_per_image)                        # 4
    flat_data = jax.random.normal(ks[6], (n_patches, T_PER_PATCH * D_SUB), jnp.float32)

    # Indicator tokens live at the top of the visual-tokenizer vocab.
    indicator_tokens = jnp.array(
        [VISUAL_VOCAB - 1, VISUAL_VOCAB - 2, VISUAL_VOCAB - 3,                         # image 0: 1+2 = 3
         VISUAL_VOCAB - 1, VISUAL_VOCAB - 2, VISUAL_VOCAB - 3, VISUAL_VOCAB - 4],      # image 1: 3+1 = 4
        dtype=jnp.int32)

    # Per-image multimodal lengths: 1*(1+8)+2 = 11 and 3*(1+8)+1 = 28 -> 39 pads; seq = 48.
    text_tokens = [5, 7, 11, 13, 17, 19, 23, 29, 31]
    ids = ([text_tokens[0]] + [IMAGE_PAD_TOKEN_ID] * 11 +
           text_tokens[1:3] + [IMAGE_PAD_TOKEN_ID] * 28 + text_tokens[3:])
    input_ids = jnp.array(ids, dtype=jnp.int32)               # (48,)
    positions = jnp.arange(input_ids.shape[0], dtype=jnp.int32)

    hidden_states = ovis2_forward(input_ids, positions, flat_data, indicator_tokens,
                                  patches_per_image, params)
    hidden_states = jax.block_until_ready(hidden_states)

    ref = _ref_forward(input_ids, flat_data, indicator_tokens, patches_per_image, params)
    # bf16 MXU operands + approx EUP reciprocal in the softmax denominator -> 1e-2 tolerance.
    np.testing.assert_allclose(np.asarray(hidden_states), np.asarray(ref),
                               rtol=1e-2, atol=1e-2)

    assert hidden_states.shape == (input_ids.shape[0], HIDDEN)
    print("KERNEL_OK")
</pallas_src>

<mosaic_0001>
module attributes {stable_mosaic.version = 11 : i64} {
  func.func @_vision_kernel(%arg0: i32, %arg1: memref<32x128xbf16, #tpu.memory_space<vmem>>, %arg2: memref<128x256xbf16, #tpu.memory_space<vmem>>, %arg3: memref<256x128xbf16, #tpu.memory_space<vmem>>, %arg4: memref<32x128xf32, #tpu.memory_space<vmem>>) attributes {dimension_semantics = [#tpu.dimension_semantics<arbitrary>], iteration_bounds = array<i64: 1>, scalar_prefetch = 0 : i64, scratch_operands = 0 : i64, tpu.core_type = #tpu.core_type<tc>, window_params = [{pipeline_mode = #tpu.pipeline_mode<synchronous>, transform_indices = @transform_0, window_bounds = array<i64: 32, 128>}, {pipeline_mode = #tpu.pipeline_mode<synchronous>, transform_indices = @transform_1, window_bounds = array<i64: 128, 256>}, {pipeline_mode = #tpu.pipeline_mode<synchronous>, transform_indices = @transform_2, window_bounds = array<i64: 256, 128>}, {pipeline_mode = #tpu.pipeline_mode<synchronous>, transform_indices = @transform_3, window_bounds = array<i64: 32, 128>}]} {
    %c0 = arith.constant 0 : index
    %c0_0 = arith.constant 0 : index
    %0 = vector.load %arg1[%c0, %c0_0] : memref<32x128xbf16, #tpu.memory_space<vmem>>, vector<32x128xbf16>
    %c0_1 = arith.constant 0 : index
    %c0_2 = arith.constant 0 : index
    %1 = vector.load %arg2[%c0_1, %c0_2] : memref<128x256xbf16, #tpu.memory_space<vmem>>, vector<128x256xbf16>
    %cst = arith.constant dense<0.000000e+00> : vector<32x256xf32>
    %2 = tpu.matmul %0, %1, %cst {dimension_numbers = #tpu.dot_dimension_numbers<[1], [0], [0], [1], [0, 0, 1, 1], [], []>} : vector<32x128xbf16>, vector<128x256xbf16>, vector<32x256xf32> -> vector<32x256xf32>
    %cst_3 = arith.constant dense<0xFF800000> : vector<32xf32>
    %3 = vector.multi_reduction <maximumf>, %2, %cst_3 [1] : vector<32x256xf32> to vector<32xf32>
    %4 = vector.shape_cast %3 : vector<32xf32> to vector<32x1xf32>
    %5 = vector.broadcast %4 : vector<32x1xf32> to vector<32x256xf32>
    %6 = arith.subf %2, %5 : vector<32x256xf32>
    %7 = math.exp %6 : vector<32x256xf32>
    %cst_4 = arith.constant dense<0.000000e+00> : vector<32xf32>
    %8 = vector.multi_reduction <add>, %7, %cst_4 [1] : vector<32x256xf32> to vector<32xf32>
    %9 = vector.shape_cast %8 : vector<32xf32> to vector<32x1xf32>
    %10 = tpu.reciprocal %9 {approx = true} : vector<32x1xf32> -> vector<32x1xf32>
    %11 = vector.broadcast %10 : vector<32x1xf32> to vector<32x256xf32>
    %12 = arith.mulf %7, %11 : vector<32x256xf32>
    %13 = arith.truncf %12 : vector<32x256xf32> to vector<32x256xbf16>
    %c0_5 = arith.constant 0 : index
    %c0_6 = arith.constant 0 : index
    %14 = vector.load %arg3[%c0_5, %c0_6] : memref<256x128xbf16, #tpu.memory_space<vmem>>, vector<256x128xbf16>
    %cst_7 = arith.constant dense<0.000000e+00> : vector<32x128xf32>
    %15 = tpu.matmul %13, %14, %cst_7 {dimension_numbers = #tpu.dot_dimension_numbers<[1], [0], [0], [1], [0, 0, 1, 1], [], []>} : vector<32x256xbf16>, vector<256x128xbf16>, vector<32x128xf32> -> vector<32x128xf32>
    %c0_8 = arith.constant 0 : index
    %c0_9 = arith.constant 0 : index
    %16 = vector.load %arg4[%c0_8, %c0_9] : memref<32x128xf32, #tpu.memory_space<vmem>>, vector<32x128xf32>
    tpu.vector_store %arg4[%c0_8, %c0_9], %15 {strides = array<i32>} : memref<32x128xf32, #tpu.memory_space<vmem>>, vector<32x128xf32>,
    return
  }
  func.func @transform_0(%arg0: i32) -> (i32, i32) {
    %c0_i32 = arith.constant 0 : i32
    %c0_i32_0 = arith.constant 0 : i32
    %c0_i32_1 = arith.constant 0 : i32
    return %c0_i32, %c0_i32_0 : i32, i32
  }
  func.func @transform_1(%arg0: i32) -> (i32, i32) {
    %c0_i32 = arith.constant 0 : i32
    %c0_i32_0 = arith.constant 0 : i32
    %c0_i32_1 = arith.constant 0 : i32
    return %c0_i32, %c0_i32_0 : i32, i32
  }
  func.func @transform_2(%arg0: i32) -> (i32, i32) {
    %c0_i32 = arith.constant 0 : i32
    %c0_i32_0 = arith.constant 0 : i32
    %c0_i32_1 = arith.constant 0 : i32
    return %c0_i32, %c0_i32_0 : i32, i32
  }
  func.func @transform_3(%arg0: i32) -> (i32, i32) {
    %c0_i32 = arith.constant 0 : i32
    %c0_i32_0 = arith.constant 0 : i32
    %c0_i32_1 = arith.constant 0 : i32
    return %c0_i32, %c0_i32_0 : i32, i32
  }
}

</mosaic_0001>

<llo_original>
// kernel: tpu_custom_call.1
$region0: #{tpu_custom_call.1}
  #allocation0 [shape = 'u32[]', space=smem, size = 0x4, offset = 0x4, fixed_abs, tag = 'smem constant byte address 0x4 - core index']
  #allocation1 [shape = 'u32[144,128]{1,0:T(1,128)}', space=vmem, size = 0x12000, scoped, tag = 'internal scratch']
  %s0 = inlined_call_operand.hbm [shape: bf16[32,128], index: 0, kind: input, shape index: {}]
  %s1 = inlined_call_operand.hbm [shape: bf16[128,256], index: 1, kind: input, shape index: {}]
  %s2 = inlined_call_operand.hbm [shape: bf16[256,128], index: 2, kind: input, shape index: {}]
  %s3 = inlined_call_operand.hbm [shape: f32[32,128], index: 3, kind: output, shape index: {}]
  %s4 = sld [smem:[#allocation0]]
  $region34: #{tpu_custom_call.1} parent=0
    _
  %s6 = ssub.s32 1, %s4
  %s7 = scalar_select 0, %s6, %s4
  $region1: #{tpu_custom_call.1} parent=0
    #allocation2 [shape = 'u8[8192]{0}', space=vmem, size = 0x2000, scoped, tag = 'input window, operand 0, single buffered']
    #allocation3 [shape = 's32[1]{0}', space=sflag, size = 0x4, scoped, tag = 'scoped memory for tpu_custom_call.1']
    #allocation4 [shape = 's32[1]{0}', space=sflag, size = 0x4, scoped, tag = 'scoped memory for tpu_custom_call.1']
    #allocation5 [shape = 'u8[65536]{0}', space=vmem, size = 0x10000, scoped, tag = 'input window, operand 1, single buffered']
    #allocation6 [shape = 's32[1]{0}', space=sflag, size = 0x4, scoped, tag = 'scoped memory for tpu_custom_call.1']
    #allocation7 [shape = 'u8[65536]{0}', space=vmem, size = 0x10000, scoped, tag = 'input window, operand 2, single buffered']
    #allocation8 [shape = 'u8[16384]{0}', space=vmem, size = 0x4000, scoped, tag = 'output window, operand 0, single buffered']
    %8 = vsyncpa [#allocation3], 0
    %9 = vsyncpa [#allocation6], 0
    %10 = vsyncpa [#allocation4], 0
    // Predicated region
    $region2: #{tpu_custom_call.1} parent=1 // pred_check
      _
    $region3: #{tpu_custom_call.1} parent=1 // pred_check_branch
      %12 = sbr.rel (0) target = $region5
    $region4: #{tpu_custom_call.1} parent=1 // pred_region
      %s14 = ssub.s32 256, 256
      %15 = vsyncadd [#allocation3], %s14
      %s16 = sshll.u32 [#allocation2], 4
      %s17 = int_to_ptr.vmem [resolvable:$true] %s16
      %22 = dma.hbm_to_vmem [thread:$0]  %s0, 256, %s17, [#allocation3], 64, 64, 4
    $region5: #{tpu_custom_call.1} parent=1 // pred_fallthru
      _
    // Predicated region
    $region6: #{tpu_custom_call.1} parent=1 // pred_check
      _
    $region7: #{tpu_custom_call.1} parent=1 // pred_check_branch
      %24 = sbr.rel (0) target = $region9
    $region8: #{tpu_custom_call.1} parent=1 // pred_region
      %s26 = ssub.s32 2048, 2048
      %27 = vsyncadd [#allocation6], %s26
      %s28 = sshll.u32 [#allocation5], 4
      %s29 = int_to_ptr.vmem [resolvable:$true] %s28
      %34 = dma.hbm_to_vmem [thread:$0]  %s1, 2048, %s29, [#allocation6], 128, 128, 8
    $region9: #{tpu_custom_call.1} parent=1 // pred_fallthru
      _
    // Predicated region
    $region10: #{tpu_custom_call.1} parent=1 // pred_check
      _
    $region11: #{tpu_custom_call.1} parent=1 // pred_check_branch
      %36 = sbr.rel (0) target = $region13
    $region12: #{tpu_custom_call.1} parent=1 // pred_region
      %s38 = ssub.s32 2048, 2048
      %39 = vsyncadd [#allocation6], %s38
      %s40 = sshll.u32 [#allocation7], 4
      %s41 = int_to_ptr.vmem [resolvable:$true] %s40
      %46 = dma.hbm_to_vmem [thread:$0]  %s2, 2048, %s41, [#allocation6], 64, 64, 4
    $region13: #{tpu_custom_call.1} parent=1 // pred_fallthru
      _
    // Predicated region
    $region14: #{tpu_custom_call.1} parent=1 // pred_check
      _
    $region15: #{tpu_custom_call.1} parent=1 // pred_check_branch
      %48 = sbr.rel (0) target = $region17
    $region16: #{tpu_custom_call.1} parent=1 // pred_region
      %49 = dma.done [#allocation3], 256
    $region17: #{tpu_custom_call.1} parent=1 // pred_fallthru
      _
    // Predicated region
    $region18: #{tpu_custom_call.1} parent=1 // pred_check
      _
    $region19: #{tpu_custom_call.1} parent=1 // pred_check_branch
      %51 = sbr.rel (0) target = $region21
    $region20: #{tpu_custom_call.1} parent=1 // pred_region
      %52 = dma.done [#allocation6], 2048
    $region21: #{tpu_custom_call.1} parent=1 // pred_fallthru
      _
    // Predicated region
    $region22: #{tpu_custom_call.1} parent=1 // pred_check
      _
    $region23: #{tpu_custom_call.1} parent=1 // pred_check_branch
      %54 = sbr.rel (0) target = $region25
    $region24: #{tpu_custom_call.1} parent=1 // pred_region
      %55 = dma.done [#allocation6], 2048
    $region25: #{tpu_custom_call.1} parent=1 // pred_fallthru
      _
    %v57 = vld [vmem:[#allocation2] sm:$0xf]
    %v58 = vld [vmem:[#allocation2 + $0x4] sm:$0xf]
    %v59 = vld [vmem:[#allocation2 + $0x8] sm:$0xf]
    %v60 = vld [vmem:[#allocation2 + $0xc] sm:$0xf]
    %v61 = vld [vmem:[#allocation5] sm:$0xff]
    %v62 = vld [vmem:[#allocation5 + $0x8] sm:$0xff]
    %v63 = vld [vmem:[#allocation5 + $0x10] sm:$0xff]
    %v64 = vld [vmem:[#allocation5 + $0x18] sm:$0xff]
    %v65 = vld [vmem:[#allocation5 + $0x20] sm:$0xff]
    %v66 = vld [vmem:[#allocation5 + $0x28] sm:$0xff]
    %v67 = vld [vmem:[#allocation5 + $0x30] sm:$0xff]
    %v68 = vld [vmem:[#allocation5 + $0x38] sm:$0xff]
    %v69 = vld [vmem:[#allocation5 + $0x40] sm:$0xff]
    %v70 = vld [vmem:[#allocation5 + $0x48] sm:$0xff]
    %v71 = vld [vmem:[#allocation5 + $0x50] sm:$0xff]
    %v72 = vld [vmem:[#allocation5 + $0x58] sm:$0xff]
    %v73 = vld [vmem:[#allocation5 + $0x60] sm:$0xff]
    %v74 = vld [vmem:[#allocation5 + $0x68] sm:$0xff]
    %v75 = vld [vmem:[#allocation5 + $0x70] sm:$0xff]
    %v76 = vld [vmem:[#allocation5 + $0x78] sm:$0xff]
    %v81 = vunpack.c.l.b16 %v57
    %v82 = vunpack.c.l.b16 %v58
    %v83 = vunpack.c.l.b16 %v59
    %v84 = vunpack.c.l.b16 %v60
    %v85 = vpack.c.b16 %v82, %v81
    %v86 = vpack.c.b16 %v84, %v83
    %v105 = vunpack.c.l.b16 %v61
    %v106 = vunpack.c.h.b16 %v61
    %v107 = vunpack.c.l.b16 %v62
    %v108 = vunpack.c.h.b16 %v62
    %v109 = vunpack.c.l.b16 %v63
    %v110 = vunpack.c.h.b16 %v63
    %v111 = vunpack.c.l.b16 %v64
    %v112 = vunpack.c.h.b16 %v64
    %v113 = vunpack.c.l.b16 %v65
    %v114 = vunpack.c.h.b16 %v65
    %v115 = vunpack.c.l.b16 %v66
    %v116 = vunpack.c.h.b16 %v66
    %v117 = vunpack.c.l.b16 %v67
    %v118 = vunpack.c.h.b16 %v67
    %v119 = vunpack.c.l.b16 %v68
    %v120 = vunpack.c.h.b16 %v68
    %v121 = vunpack.c.l.b16 %v69
    %v122 = vunpack.c.h.b16 %v69
    %v123 = vunpack.c.l.b16 %v70
    %v124 = vunpack.c.h.b16 %v70
    %v125 = vunpack.c.l.b16 %v71
    %v126 = vunpack.c.h.b16 %v71
    %v127 = vunpack.c.l.b16 %v72
    %v128 = vunpack.c.h.b16 %v72
    %v129 = vunpack.c.l.b16 %v73
    %v130 = vunpack.c.h.b16 %v73
    %v131 = vunpack.c.l.b16 %v74
    %v132 = vunpack.c.h.b16 %v74
    %v133 = vunpack.c.l.b16 %v75
    %v134 = vunpack.c.h.b16 %v75
    %v135 = vunpack.c.l.b16 %v76
    %v136 = vunpack.c.h.b16 %v76
    %v137 = vpack.c.b16 %v107, %v105
    %v138 = vpack.c.b16 %v108, %v106
    %v139 = vpack.c.b16 %v111, %v109
    %v140 = vpack.c.b16 %v112, %v110
    %v141 = vpack.c.b16 %v115, %v113
    %v142 = vpack.c.b16 %v116, %v114
    %v143 = vpack.c.b16 %v119, %v117
    %v144 = vpack.c.b16 %v120, %v118
    %v145 = vpack.c.b16 %v123, %v121
    %v146 = vpack.c.b16 %v124, %v122
    %v147 = vpack.c.b16 %v127, %v125
    %v148 = vpack.c.b16 %v128, %v126
    %v149 = vpack.c.b16 %v131, %v129
    %v150 = vpack.c.b16 %v132, %v130
    %v151 = vpack.c.b16 %v135, %v133
    %v152 = vpack.c.b16 %v136, %v134
    %169 = vmatprep.subr.bf16.mxu0 %v138
    %170 = vmatpush1.bf16.msra.mxu0 %v137
    %171 = vmatprep.subr.bf16.mxu0 %v140
    %172 = vmatpush1.bf16.msra.mxu0 %v139
    %173 = vmatprep.subr.bf16.mxu0 %v142
    %174 = vmatpush1.bf16.msra.mxu0 %v141
    %175 = vmatprep.subr.bf16.mxu0 %v144
    %176 = vmatpush1.bf16.msra.mxu0 %v143
    %177 = vmatprep.subr.bf16.mxu0 %v146
    %178 = vmatpush1.bf16.msra.mxu0 %v145
    %179 = vmatprep.subr.bf16.mxu0 %v148
    %180 = vmatpush1.bf16.msra.mxu0 %v147
    %181 = vmatprep.subr.bf16.mxu0 %v150
    %182 = vmatpush1.bf16.msra.mxu0 %v149
    %183 = vmatprep.subr.bf16.mxu0 %v152
    %184 = vmatpush1.bf16.msra.mxu0 %v151
    %185 = vmatprep.subr.bf16.mxu0 0
    %186 = vmatpush1.bf16.msra.mxu0 0
    %187 = vmatprep.subr.bf16.mxu0 0
    %188 = vmatpush1.bf16.msra.mxu0 0
    %189 = vmatprep.subr.bf16.mxu0 0
    %190 = vmatpush1.bf16.msra.mxu0 0
    %191 = vmatprep.subr.bf16.mxu0 0
    %192 = vmatpush1.bf16.msra.mxu0 0
    %193 = vmatprep.subr.bf16.mxu0 0
    %194 = vmatpush1.bf16.msra.mxu0 0
    %195 = vmatprep.subr.bf16.mxu0 0
    %196 = vmatpush1.bf16.msra.mxu0 0
    %197 = vmatprep.subr.bf16.mxu0 0
    %198 = vmatpush1.bf16.msra.mxu0 0
    %199 = vmatprep.subr.bf16.mxu0 0
    %200 = vmatpush1.bf16.msra.mxu0 0
    %201 = vmatprep.mubr.bf16.mxu0 0
    %202 = vmatmul.mubr.bf16.gmra.mrb[0].mxu0 %v85
    %v203 = vpop.f32.mrb[0].mxu0
    %v204 = vadd.f32 0.0, %v203
    %v205 = vpop.f32.mrb[0].mxu0
    %v206 = vadd.f32 0.0, %v205
    %v207 = vpop.f32.mrb[0].mxu0
    %v208 = vadd.f32 0.0, %v207
    %v209 = vpop.f32.mrb[0].mxu0
    %v210 = vadd.f32 0.0, %v209
    %211 = vmatprep.mubr.bf16.mxu0 0
    %212 = vmatmul.mubr.bf16.gmra.mrb[0].mxu0 %v86
    %v213 = vpop.f32.mrb[0].mxu0
    %v214 = vadd.f32 0.0, %v213
    %v215 = vpop.f32.mrb[0].mxu0
    %v216 = vadd.f32 0.0, %v215
    %v217 = vpop.f32.mrb[0].mxu0
    %v218 = vadd.f32 0.0, %v217
    %v219 = vpop.f32.mrb[0].mxu0
    %v220 = vadd.f32 0.0, %v219
    %221 = vdwg.mxu0
    %v222 = vmax.f32 %v204, %v206
    %223 = vmax.xlane.f32.xlu0 %v222
    %v224 = vpop.xlane.xlu0 %223
    %v225 = vmax.f32 %v208, %v210
    %226 = vmax.xlane.f32.xlu0 %v225
    %v227 = vpop.xlane.xlu0 %226
    %v228 = vmax.f32 %v214, %v216
    %229 = vmax.xlane.f32.xlu0 %v228
    %v230 = vpop.xlane.xlu0 %229
    %v231 = vmax.f32 %v218, %v220
    %232 = vmax.xlane.f32.xlu0 %v231
    %v233 = vpop.xlane.xlu0 %232
    %v234 = vsub.f32 %v204, %v224
    %v235 = vsub.f32 %v206, %v224
    %v236 = vsub.f32 %v208, %v227
    %v237 = vsub.f32 %v210, %v227
    %v238 = vsub.f32 %v214, %v230
    %v239 = vsub.f32 %v216, %v230
    %v240 = vsub.f32 %v218, %v233
    %v241 = vsub.f32 %v220, %v233
    %v242 = vmul.f32 %v234, 1.442695
    %v243 = vpow.pop %v242
    %v244 = vmul.f32 %v235, 1.442695
    %v245 = vpow.pop %v244
    %v246 = vmul.f32 %v236, 1.442695
    %v247 = vpow.pop %v246
    %v248 = vmul.f32 %v237, 1.442695
    %v249 = vpow.pop %v248
    %v250 = vmul.f32 %v238, 1.442695
    %v251 = vpow.pop %v250
    %v252 = vmul.f32 %v239, 1.442695
    %v253 = vpow.pop %v252
    %v254 = vmul.f32 %v240, 1.442695
    %v255 = vpow.pop %v254
    %v256 = vmul.f32 %v241, 1.442695
    %v257 = vpow.pop %v256
    %v258 = vadd.f32 %v243, %v245
    %259 = vadd.xlane.f32.xlu0 %v258
    %v260 = vpop.xlane.xlu0 %259
    %v261 = vadd.f32 %v247, %v249
    %262 = vadd.xlane.f32.xlu0 %v261
    %v263 = vpop.xlane.xlu0 %262
    %v264 = vadd.f32 %v251, %v253
    %265 = vadd.xlane.f32.xlu0 %v264
    %v266 = vpop.xlane.xlu0 %265
    %v267 = vadd.f32 %v255, %v257
    %268 = vadd.xlane.f32.xlu0 %v267
    %v269 = vpop.xlane.xlu0 %268
    %v270 = vrcp.pop %v260
    %v271 = vrcp.pop %v263
    %v272 = vrcp.pop %v266
    %v273 = vrcp.pop %v269
    %v274 = vmul.f32 %v243, %v270
    %v275 = vmul.f32 %v245, %v270
    %v276 = vmul.f32 %v247, %v271
    %v277 = vmul.f32 %v249, %v271
    %v278 = vmul.f32 %v251, %v272
    %v279 = vmul.f32 %v253, %v272
    %v280 = vmul.f32 %v255, %v273
    %v281 = vmul.f32 %v257, %v273
    %v282 = vpack.c.bf16 %v276, %v274
    %v283 = vpack.c.bf16 %v277, %v275
    %v284 = vpack.c.bf16 %v280, %v278
    %v285 = vpack.c.bf16 %v281, %v279
    %v286 = vld [vmem:[#allocation7] sm:$0xf]
    %v287 = vld [vmem:[#allocation7 + $0x4] sm:$0xf]
    %v288 = vld [vmem:[#allocation7 + $0x8] sm:$0xf]
    %v289 = vld [vmem:[#allocation7 + $0xc] sm:$0xf]
    %v290 = vld [vmem:[#allocation7 + $0x10] sm:$0xf]
    %v291 = vld [vmem:[#allocation7 + $0x14] sm:$0xf]
    %v292 = vld [vmem:[#allocation7 + $0x18] sm:$0xf]
    %v293 = vld [vmem:[#allocation7 + $0x1c] sm:$0xf]
    %v294 = vld [vmem:[#allocation7 + $0x20] sm:$0xf]
    %v295 = vld [vmem:[#allocation7 + $0x24] sm:$0xf]
    %v296 = vld [vmem:[#allocation7 + $0x28] sm:$0xf]
    %v297 = vld [vmem:[#allocation7 + $0x2c] sm:$0xf]
    %v298 = vld [vmem:[#allocation7 + $0x30] sm:$0xf]
    %v299 = vld [vmem:[#allocation7 + $0x34] sm:$0xf]
    %v300 = vld [vmem:[#allocation7 + $0x38] sm:$0xf]
    %v301 = vld [vmem:[#allocation7 + $0x3c] sm:$0xf]
    %v302 = vld [vmem:[#allocation7 + $0x40] sm:$0xf]
    %v303 = vld [vmem:[#allocation7 + $0x44] sm:$0xf]
    %v304 = vld [vmem:[#allocation7 + $0x48] sm:$0xf]
    %v305 = vld [vmem:[#allocation7 + $0x4c] sm:$0xf]
    %v306 = vld [vmem:[#allocation7 + $0x50] sm:$0xf]
    %v307 = vld [vmem:[#allocation7 + $0x54] sm:$0xf]
    %v308 = vld [vmem:[#allocation7 + $0x58] sm:$0xf]
    %v309 = vld [vmem:[#allocation7 + $0x5c] sm:$0xf]
    %v310 = vld [vmem:[#allocation7 + $0x60] sm:$0xf]
    %v311 = vld [vmem:[#allocation7 + $0x64] sm:$0xf]
    %v312 = vld [vmem:[#allocation7 + $0x68] sm:$0xf]
    %v313 = vld [vmem:[#allocation7 + $0x6c] sm:$0xf]
    %v314 = vld [vmem:[#allocation7 + $0x70] sm:$0xf]
    %v315 = vld [vmem:[#allocation7 + $0x74] sm:$0xf]
    %v316 = vld [vmem:[#allocation7 + $0x78] sm:$0xf]
    %v317 = vld [vmem:[#allocation7 + $0x7c] sm:$0xf]
    %v350 = vunpack.c.l.b16 %v286
    %v351 = vunpack.c.l.b16 %v287
    %v352 = vunpack.c.l.b16 %v288
    %v353 = vunpack.c.l.b16 %v289
    %v354 = vunpack.c.l.b16 %v290
    %v355 = vunpack.c.l.b16 %v291
    %v356 = vunpack.c.l.b16 %v292
    %v357 = vunpack.c.l.b16 %v293
    %v358 = vunpack.c.l.b16 %v294
    %v359 = vunpack.c.l.b16 %v295
    %v360 = vunpack.c.l.b16 %v296
    %v361 = vunpack.c.l.b16 %v297
    %v362 = vunpack.c.l.b16 %v298
    %v363 = vunpack.c.l.b16 %v299
    %v364 = vunpack.c.l.b16 %v300
    %v365 = vunpack.c.l.b16 %v301
    %v366 = vunpack.c.l.b16 %v302
    %v367 = vunpack.c.l.b16 %v303
    %v368 = vunpack.c.l.b16 %v304
    %v369 = vunpack.c.l.b16 %v305
    %v370 = vunpack.c.l.b16 %v306
    %v371 = vunpack.c.l.b16 %v307
    %v372 = vunpack.c.l.b16 %v308
    %v373 = vunpack.c.l.b16 %v309
    %v374 = vunpack.c.l.b16 %v310
    %v375 = vunpack.c.l.b16 %v311
    %v376 = vunpack.c.l.b16 %v312
    %v377 = vunpack.c.l.b16 %v313
    %v378 = vunpack.c.l.b16 %v314
    %v379 = vunpack.c.l.b16 %v315
    %v380 = vunpack.c.l.b16 %v316
    %v381 = vunpack.c.l.b16 %v317
    %v382 = vpack.c.b16 %v351, %v350
    %v383 = vpack.c.b16 %v353, %v352
    %v384 = vpack.c.b16 %v355, %v354
    %v385 = vpack.c.b16 %v357, %v356
    %v386 = vpack.c.b16 %v359, %v358
    %v387 = vpack.c.b16 %v361, %v360
    %v388 = vpack.c.b16 %v363, %v362
    %v389 = vpack.c.b16 %v365, %v364
    %v390 = vpack.c.b16 %v367, %v366
    %v391 = vpack.c.b16 %v369, %v368
    %v392 = vpack.c.b16 %v371, %v370
    %v393 = vpack.c.b16 %v373, %v372
    %v394 = vpack.c.b16 %v375, %v374
    %v395 = vpack.c.b16 %v377, %v376
    %v396 = vpack.c.b16 %v379, %v378
    %v397 = vpack.c.b16 %v381, %v380
    %414 = vmatprep.subr.bf16.mxu0 0
    %415 = vmatpush1.bf16.msra.mxu0 %v382
    %416 = vmatprep.subr.bf16.mxu0 0
    %417 = vmatpush1.bf16.msra.mxu0 %v383
    %418 = vmatprep.subr.bf16.mxu0 0
    %419 = vmatpush1.bf16.msra.mxu0 %v384
    %420 = vmatprep.subr.bf16.mxu0 0
    %421 = vmatpush1.bf16.msra.mxu0 %v385
    %422 = vmatprep.subr.bf16.mxu0 0
    %423 = vmatpush1.bf16.msra.mxu0 %v386
    %424 = vmatprep.subr.bf16.mxu0 0
    %425 = vmatpush1.bf16.msra.mxu0 %v387
    %426 = vmatprep.subr.bf16.mxu0 0
    %427 = vmatpush1.bf16.msra.mxu0 %v388
    %428 = vmatprep.subr.bf16.mxu0 0
    %429 = vmatpush1.bf16.msra.mxu0 %v389
    %430 = vmatprep.subr.bf16.mxu0 0
    %431 = vmatpush1.bf16.msra.mxu0 %v390
    %432 = vmatprep.subr.bf16.mxu0 0
    %433 = vmatpush1.bf16.msra.mxu0 %v391
    %434 = vmatprep.subr.bf16.mxu0 0
    %435 = vmatpush1.bf16.msra.mxu0 %v392
    %436 = vmatprep.subr.bf16.mxu0 0
    %437 = vmatpush1.bf16.msra.mxu0 %v393
    %438 = vmatprep.subr.bf16.mxu0 0
    %439 = vmatpush1.bf16.msra.mxu0 %v394
    %440 = vmatprep.subr.bf16.mxu0 0
    %441 = vmatpush1.bf16.msra.mxu0 %v395
    %442 = vmatprep.subr.bf16.mxu0 0
    %443 = vmatpush1.bf16.msra.mxu0 %v396
    %444 = vmatprep.subr.bf16.mxu0 0
    %445 = vmatpush1.bf16.msra.mxu0 %v397
    %446 = vmatprep.mubr.bf16.mxu0 %v283
    %447 = vmatmul.mubr.bf16.gmra.mrb[0].mxu0 %v282
    %v448 = vpop.f32.mrb[0].mxu0
    %v449 = vadd.f32 0.0, %v448
    %v450 = vpop.f32.mrb[0].mxu0
    %v451 = vpop.f32.mrb[0].mxu0
    %v452 = vadd.f32 0.0, %v451
    %v453 = vpop.f32.mrb[0].mxu0
    %454 = vmatprep.mubr.bf16.mxu0 %v285
    %455 = vmatmul.mubr.bf16.gmra.mrb[0].mxu0 %v284
    %v456 = vpop.f32.mrb[0].mxu0
    %v457 = vadd.f32 0.0, %v456
    %v458 = vpop.f32.mrb[0].mxu0
    %v459 = vpop.f32.mrb[0].mxu0
    %v460 = vadd.f32 0.0, %v459
    %v461 = vpop.f32.mrb[0].mxu0
    %462 = vdwg.mxu0
    %463 = vst [vmem:[#allocation8] sm:$0xff] %v449
    %464 = vst [vmem:[#allocation8 + $0x8] sm:$0xff] %v452
    %465 = vst [vmem:[#allocation8 + $0x10] sm:$0xff] %v457
    %466 = vst [vmem:[#allocation8 + $0x18] sm:$0xff] %v460
    // Predicated region
    $region26: #{tpu_custom_call.1} parent=1 // pred_check
      _
    $region27: #{tpu_custom_call.1} parent=1 // pred_check_branch
      %468 = sbr.rel (0) target = $region29
    $region28: #{tpu_custom_call.1} parent=1 // pred_region
      %s470 = ssub.s32 512, 512
      %471 = vsyncadd [#allocation4], %s470
      %s472 = sshll.u32 [#allocation8], 4
      %s473 = int_to_ptr.vmem [resolvable:$true] %s472
      %478 = dma.vmem_to_hbm [thread:$0]  %s473, 512, %s3, [#allocation4], 128, 128, 8
    $region29: #{tpu_custom_call.1} parent=1 // pred_fallthru
      _
    // Predicated region
    $region30: #{tpu_custom_call.1} parent=1 // pred_check
      _
    $region31: #{tpu_custom_call.1} parent=1 // pred_check_branch
      %480 = sbr.rel (0) target = $region33
    $region32: #{tpu_custom_call.1} parent=1 // pred_region
      %481 = dma.done [#allocation4], 512
    $region33: #{tpu_custom_call.1} parent=1 // pred_fallthru
      _
    %482 = vsyncpa [#allocation3], 1
    %483 = vsyncpa [#allocation6], 1
    %484 = vsyncpa [#allocation4], 1

</llo_original>
